<compile_context>
chip_gen: v7x
topology: tpu7x:2x2x1
jax: 0.10.0
libtpu: 0.0.40
codegen_flags: <defaults>
</compile_context>

<pallas_src>
import functools

import jax
import jax.numpy as jnp
from jax.experimental import pallas as pl
from jax.experimental.pallas import tpu as pltpu


def _layer_scale_kernel(x_ref, gamma_ref, o_ref):
    # x_ref: (TR, TL) tile, gamma_ref: (TR, 1) per-row scale.
    # Broadcast over the lane (length) axis; single VPU multiply.
    o_ref[...] = x_ref[...] * gamma_ref[...]


def _choose_tiles(nc: int, l: int, itemsize: int,
                  target_bytes: int = 2 * 1024 * 1024):
    """Pick (row_tile, lane_tile).

    Lane tile: largest of {2048,...,128} dividing L (else the full extent,
    which is always a legal block). Row tile: dtype-aligned multiple capped
    near `target_bytes`; the grid uses cdiv so a ragged last row-block is
    fine (writes to the padded region are masked).
    """
    # Lane (last-dim) tile.
    if l >= 128 and l % 128 == 0:
        tl = 128
        for cand in (2048, 1024, 512, 256):
            if l % cand == 0:
                tl = cand
                break
        tl = min(tl, l)
    else:
        tl = l  # full-extent lane block (legal even if not 128-aligned)

    # Sublane (row) tile: 8 for f32, 16 for bf16, 32 for int8 packing.
    align = max(8, 32 // max(1, itemsize))
    if nc <= align:
        return nc, tl  # full-extent row block

    max_rows = max(align,
                   (target_bytes // max(1, tl * itemsize)) // align * align)
    tr = min(max_rows, (nc // align) * align)
    tr = max(tr, align)
    return tr, tl


@functools.partial(jax.jit, static_argnames=("donate_x",))
def layer_scale_1d(x: jax.Array, gamma: jax.Array,
                   donate_x: bool = False) -> jax.Array:
    """x: (N, C, L), gamma: (C,) -> (N, C, L). Matches x * gamma.view(1,-1,1)."""
    n, c, l = x.shape
    nc = n * c
    itemsize = jnp.dtype(x.dtype).itemsize

    # Flatten to a 2D (rows, length) problem (contiguous -> free reshape).
    # One scale per row is N*C elements, i.e. negligible to materialize.
    x2d = x.reshape(nc, l)
    gamma_rows = jnp.broadcast_to(
        gamma.astype(x.dtype).reshape(1, c), (n, c)).reshape(nc, 1)

    tr, tl = _choose_tiles(nc, l, itemsize)
    grid = (pl.cdiv(nc, tr), pl.cdiv(l, tl))

    total = n * c * l
    cost = pl.CostEstimate(
        flops=total,
        transcendentals=0,
        bytes_accessed=2 * total * itemsize + nc * itemsize,
    )

    out2d = pl.pallas_call(
        _layer_scale_kernel,
        out_shape=jax.ShapeDtypeStruct((nc, l), x.dtype),
        grid_spec=pltpu.PrefetchScalarGridSpec(
            num_scalar_prefetch=0,
            grid=grid,
            in_specs=[
                # x tile: lane-dense (TR, TL) block.
                pl.BlockSpec((tr, tl), lambda i, j: (i, j)),
                # gamma rows: same row-block for every lane step (resident).
                pl.BlockSpec((tr, 1), lambda i, j: (i, 0)),
            ],
            out_specs=pl.BlockSpec((tr, tl), lambda i, j: (i, j)),
        ),
        compiler_params=pltpu.CompilerParams(
            dimension_semantics=("parallel", "parallel"),
        ),
        cost_estimate=cost,
        # Mirrors the PyTorch `inplace=True` path: reuse x's buffer for the
        # output (pure read-modify-write, halves the HBM footprint).
        input_output_aliases={0: 0} if donate_x else {},
    )(x2d, gamma_rows)

    return out2d.reshape(n, c, l)


if __name__ == "__main__":
    # Deterministic setup: matches LayerScale1d(dim=C, init_values=1e-5)
    N, C, L = 2, 8, 256
    init_values = 1e-5

    key = jax.random.PRNGKey(0)
    x = jax.random.normal(key, (N, C, L), dtype=jnp.float32)
    gamma = init_values * jnp.ones((C,), dtype=jnp.float32)

    out = layer_scale_1d(x, gamma)
    jax.block_until_ready(out)

    # Reference check (plain JAX broadcast == PyTorch x * gamma.view(1,-1,1)).
    ref = x * gamma.reshape(1, C, 1)
    assert out.shape == (N, C, L)
    assert out.dtype == x.dtype
    assert jnp.allclose(out, ref, atol=1e-7), "mismatch vs reference"

    print("KERNEL_OK")
</pallas_src>

<mosaic_0001>
module attributes {stable_mosaic.version = 11 : i64} {
  func.func @_layer_scale_kernel(%arg0: i32, %arg1: i32, %arg2: memref<16x256xf32, #tpu.memory_space<vmem>>, %arg3: memref<16x1xf32, #tpu.memory_space<vmem>>, %arg4: memref<16x256xf32, #tpu.memory_space<vmem>>) attributes {dimension_semantics = [#tpu.dimension_semantics<parallel>, #tpu.dimension_semantics<parallel>], iteration_bounds = array<i64: 1, 1>, scalar_prefetch = 0 : i64, scratch_operands = 0 : i64, tpu.core_type = #tpu.core_type<tc>, window_params = [{transform_indices = @transform_0, window_bounds = array<i64: 16, 256>}, {transform_indices = @transform_1, window_bounds = array<i64: 16, 1>}, {transform_indices = @transform_2, window_bounds = array<i64: 16, 256>}]} {
    %c0 = arith.constant 0 : index
    %c0_0 = arith.constant 0 : index
    %0 = vector.load %arg2[%c0, %c0_0] : memref<16x256xf32, #tpu.memory_space<vmem>>, vector<16x256xf32>
    %c0_1 = arith.constant 0 : index
    %c0_2 = arith.constant 0 : index
    %1 = vector.load %arg3[%c0_1, %c0_2] : memref<16x1xf32, #tpu.memory_space<vmem>>, vector<16x1xf32>
    %2 = vector.broadcast %1 : vector<16x1xf32> to vector<16x256xf32>
    %3 = arith.mulf %0, %2 : vector<16x256xf32>
    %c0_3 = arith.constant 0 : index
    %c0_4 = arith.constant 0 : index
    %4 = vector.load %arg4[%c0_3, %c0_4] : memref<16x256xf32, #tpu.memory_space<vmem>>, vector<16x256xf32>
    tpu.vector_store %arg4[%c0_3, %c0_4], %3 {strides = array<i32>} : memref<16x256xf32, #tpu.memory_space<vmem>>, vector<16x256xf32>,
    return
  }
  func.func @transform_0(%arg0: i32, %arg1: i32) -> (i32, i32) {
    %c0_i32 = arith.constant 0 : i32
    return %arg0, %arg1 : i32, i32
  }
  func.func @transform_1(%arg0: i32, %arg1: i32) -> (i32, i32) {
    %c0_i32 = arith.constant 0 : i32
    %c0_i32_0 = arith.constant 0 : i32
    return %arg0, %c0_i32 : i32, i32
  }
  func.func @transform_2(%arg0: i32, %arg1: i32) -> (i32, i32) {
    %c0_i32 = arith.constant 0 : i32
    return %arg0, %arg1 : i32, i32
  }
}

</mosaic_0001>

<llo_original>
// kernel: layer_scale_1d.1
$region0: #{layer_scale_1d.1}
  #allocation0 [shape = 'u32[]', space=smem, size = 0x4, offset = 0x4, fixed_abs, tag = 'smem constant byte address 0x4 - core index']
  #allocation1 [shape = 'u32[144,128]{1,0:T(1,128)}', space=vmem, size = 0x12000, scoped, tag = 'internal scratch']
  %s0 = inlined_call_operand.hbm [shape: f32[16,256], index: 0, kind: input, shape index: {}]
  %s1 = inlined_call_operand.vmem [shape: f32[16,1], index: 1, kind: input, shape index: {}]
  %s2 = inlined_call_operand.hbm [shape: f32[16,256], index: 2, kind: output, shape index: {}]
  %s3 = sld [smem:[#allocation0]]
  $region22: #{layer_scale_1d.1} parent=0
    _
  %s5 = ssub.s32 1, %s3
  %s6 = scalar_select 0, %s5, %s3
  $region1: #{layer_scale_1d.1} parent=0
    #allocation2 [shape = 'u8[16384]{0}', space=vmem, size = 0x4000, scoped, tag = 'input window, operand 0, single buffered']
    #allocation3 [shape = 's32[1]{0}', space=sflag, size = 0x4, scoped, tag = 'scoped memory for layer_scale_1d.1']
    #allocation4 [shape = 's32[1]{0}', space=sflag, size = 0x4, scoped, tag = 'scoped memory for layer_scale_1d.1']
    #allocation5 [shape = 'u8[16384]{0}', space=vmem, size = 0x4000, scoped, tag = 'output window, operand 0, single buffered']
    %7 = vsyncpa [#allocation3], 0
    %8 = vsyncpa [#allocation4], 0
    // Predicated region
    $region2: #{layer_scale_1d.1} parent=1 // pred_check
      _
    $region3: #{layer_scale_1d.1} parent=1 // pred_check_branch
      %10 = sbr.rel (0) target = $region5
    $region4: #{layer_scale_1d.1} parent=1 // pred_region
      %s12 = ssub.s32 512, 512
      %13 = vsyncadd [#allocation3], %s12
      %s14 = sshll.u32 [#allocation2], 4
      %s15 = int_to_ptr.vmem [resolvable:$true] %s14
      %20 = dma.hbm_to_vmem [thread:$0]  %s0, 512, %s15, [#allocation3], 256, 256, 16
    $region5: #{layer_scale_1d.1} parent=1 // pred_fallthru
      _
    // Predicated region
    $region6: #{layer_scale_1d.1} parent=1 // pred_check
      _
    $region7: #{layer_scale_1d.1} parent=1 // pred_check_branch
      %22 = sbr.rel (0) target = $region9
    $region8: #{layer_scale_1d.1} parent=1 // pred_region
      _
    $region9: #{layer_scale_1d.1} parent=1 // pred_fallthru
      _
    // Predicated region
    $region10: #{layer_scale_1d.1} parent=1 // pred_check
      _
    $region11: #{layer_scale_1d.1} parent=1 // pred_check_branch
      %24 = sbr.rel (0) target = $region13
    $region12: #{layer_scale_1d.1} parent=1 // pred_region
      %25 = dma.done [#allocation3], 512
    $region13: #{layer_scale_1d.1} parent=1 // pred_fallthru
      _
    %v26 = vld [vmem:[#allocation2] sm:$0xff]
    %v27 = vld [vmem:[#allocation2 + $0x8] sm:$0xff]
    %v28 = vld [vmem:[#allocation2 + $0x10] sm:$0xff]
    %v29 = vld [vmem:[#allocation2 + $0x18] sm:$0xff]
    %v30 = vld [vmem:[%s1] sm:$0xff]
    %v31 = vld [vmem:[%s1 + $0x8] sm:$0xff]
    %33 = vset.pattern.permute.xlu0 0
    %34 = vperm.xlu0 %33, %v30
    %v35 = vpop.permute.xlu0 %34
    %38 = vset.pattern.permute.xlu0 0
    %39 = vperm.xlu0 %38, %v31
    %v40 = vpop.permute.xlu0 %39
    %v42 = vmul.f32 %v26, %v35
    %v43 = vmul.f32 %v27, %v35
    %v44 = vmul.f32 %v28, %v40
    %v45 = vmul.f32 %v29, %v40
    %46 = vst [vmem:[#allocation5] sm:$0xff] %v42
    %47 = vst [vmem:[#allocation5 + $0x8] sm:$0xff] %v43
    %48 = vst [vmem:[#allocation5 + $0x10] sm:$0xff] %v44
    %49 = vst [vmem:[#allocation5 + $0x18] sm:$0xff] %v45
    // Predicated region
    $region14: #{layer_scale_1d.1} parent=1 // pred_check
      _
    $region15: #{layer_scale_1d.1} parent=1 // pred_check_branch
      %51 = sbr.rel (0) target = $region17
    $region16: #{layer_scale_1d.1} parent=1 // pred_region
      %s53 = ssub.s32 512, 512
      %54 = vsyncadd [#allocation4], %s53
      %s55 = sshll.u32 [#allocation5], 4
      %s56 = int_to_ptr.vmem [resolvable:$true] %s55
      %61 = dma.vmem_to_hbm [thread:$0]  %s56, 512, %s2, [#allocation4], 256, 256, 16
    $region17: #{layer_scale_1d.1} parent=1 // pred_fallthru
      _
    // Predicated region
    $region18: #{layer_scale_1d.1} parent=1 // pred_check
      _
    $region19: #{layer_scale_1d.1} parent=1 // pred_check_branch
      %63 = sbr.rel (0) target = $region21
    $region20: #{layer_scale_1d.1} parent=1 // pred_region
      %64 = dma.done [#allocation4], 512
    $region21: #{layer_scale_1d.1} parent=1 // pred_fallthru
      _
    %65 = vsyncpa [#allocation3], 1
    %66 = vsyncpa [#allocation4], 1

</llo_original>
